<compile_context>
chip_gen: v5e
topology: v5e:2x2
jax: 0.10.0
libtpu: 0.0.40
codegen_flags: <defaults>
</compile_context>

<pallas_src>
import functools

import jax
import jax.numpy as jnp
from jax.experimental import pallas as pl
from jax.experimental.pallas import tpu as pltpu

RADIUS = 3
N_POINTS = 8 * RADIUS
INPUT_DIM = N_POINTS + 2            # 26, as in the PyTorch script
# TODO(synk): num_classes comes from len(os.listdir(ROOT_DIR)) in the original
# script (dataset-dependent); use a small deterministic placeholder here.
NUM_CLASSES = 4
HIDDEN1 = 128
HIDDEN2 = 64


def _round_up(x, m):
    return ((x + m - 1) // m) * m


def _mlp_kernel(x_ref, w1_ref, b1_ref, w2_ref, b2_ref, w3_ref, b3_ref, o_ref):
    # Whole hot path (3 matmuls + 2 ReLUs + bias adds) fused, VMEM-resident.
    # Matmul operands in bf16, accumulation + elementwise math in f32.
    x = x_ref[...].astype(jnp.bfloat16)                       # (bb, 26)
    h1 = jnp.dot(x, w1_ref[...],
                 preferred_element_type=jnp.float32) + b1_ref[...]
    h1 = jnp.maximum(h1, 0.0)                                  # (bb, 128) f32
    h2 = jnp.dot(h1.astype(jnp.bfloat16), w2_ref[...],
                 preferred_element_type=jnp.float32) + b2_ref[...]
    h2 = jnp.maximum(h2, 0.0)                                  # (bb, 64) f32
    y = jnp.dot(h2.astype(jnp.bfloat16), w3_ref[...],
                preferred_element_type=jnp.float32) + b3_ref[...]
    o_ref[...] = y.astype(o_ref.dtype)                         # (bb, C) f32


@functools.partial(jax.jit, static_argnames=("block_b",))
def _forward_impl(x, w1, b1, w2, b2, w3, b3, *, block_b):
    B, D = x.shape
    num_classes = w3.shape[1]

    # Weights are grid-resident and tiny: cast them to bf16 once here.
    # Biases stay f32 (the bias add / ReLU run in f32 on the VPU).
    w1b = w1.astype(jnp.bfloat16)   # (26, 128)
    w2b = w2.astype(jnp.bfloat16)   # (128, 64)
    w3b = w3.astype(jnp.bfloat16)   # (64, C)

    grid = (pl.cdiv(B, block_b),)

    return pl.pallas_call(
        _mlp_kernel,
        out_shape=jax.ShapeDtypeStruct((B, num_classes), jnp.float32),
        grid_spec=pl.GridSpec(
            grid=grid,
            in_specs=[
                # batch-tiled activations
                pl.BlockSpec((block_b, D), lambda i: (i, 0)),
                # weights / biases: full blocks, grid-invariant
                pl.BlockSpec(w1b.shape, lambda i: (0, 0)),
                pl.BlockSpec(b1.shape, lambda i: (0, 0)),
                pl.BlockSpec(w2b.shape, lambda i: (0, 0)),
                pl.BlockSpec(b2.shape, lambda i: (0, 0)),
                pl.BlockSpec(w3b.shape, lambda i: (0, 0)),
                pl.BlockSpec(b3.shape, lambda i: (0, 0)),
            ],
            out_specs=pl.BlockSpec((block_b, num_classes), lambda i: (i, 0)),
        ),
        compiler_params=pltpu.CompilerParams(
            dimension_semantics=("parallel",),
            # ~14-18 MiB actually used at block_b=4096 (lane-padded x/out
            # tiles double-buffered + f32 h1/h2 temporaries); 32 MiB keeps
            # double-buffering alive on v5e and fits v7x's 64 MiB physical.
            vmem_limit_bytes=32 * 1024 * 1024,
        ),
    )(x, w1b, b1, w2b, b2, w3b, b3)


def neural_net_forward(x, w1, b1, w2, b2, w3, b3, *, block_b=4096):
    """x: (B, INPUT_DIM) float32. Returns logits (B, num_classes) float32.

    block_b defaults to 4096 (fits the 32 MiB VMEM limit on every TPU
    generation); it is clamped to the actual batch (rounded up to a sublane
    multiple of 8) and further clamped so the grid has at least 2 blocks
    whenever B > 8, letting v7x's second TensorCore participate.
    """
    B = x.shape[0]
    bb = max(8, min(int(block_b), _round_up(B, 8)))
    if B > 8:
        # Guarantee >=2 grid blocks so "parallel" can shard across 2 TCs.
        bb = min(bb, _round_up(pl.cdiv(B, 2), 8))
    bb = _round_up(bb, 8)
    return _forward_impl(x, w1, b1, w2, b2, w3, b3, block_b=bb)


def init_params(key):
    """Deterministic init mimicking PyTorch nn.Linear default: U(-1/sqrt(fan_in), ...)."""
    def linear(k, fan_in, fan_out):
        kw, kb = jax.random.split(k)
        bound = 1.0 / jnp.sqrt(fan_in)
        # stored as (in, out) so the kernel computes x @ W
        w = jax.random.uniform(kw, (fan_in, fan_out), jnp.float32, -bound, bound)
        b = jax.random.uniform(kb, (1, fan_out), jnp.float32, -bound, bound)
        return w, b

    k1, k2, k3 = jax.random.split(key, 3)
    w1, b1 = linear(k1, INPUT_DIM, HIDDEN1)
    w2, b2 = linear(k2, HIDDEN1, HIDDEN2)
    w3, b3 = linear(k3, HIDDEN2, NUM_CLASSES)
    return w1, b1, w2, b2, w3, b3


def reference_forward(x, w1, b1, w2, b2, w3, b3, dot_dtype=jnp.float32):
    def mm(a, w):
        return jnp.dot(a.astype(dot_dtype), w.astype(dot_dtype),
                       preferred_element_type=jnp.float32)
    h1 = jnp.maximum(mm(x, w1) + b1, 0.0)
    h2 = jnp.maximum(mm(h1, w2) + b2, 0.0)
    return mm(h2, w3) + b3


if __name__ == "__main__":
    key = jax.random.PRNGKey(0)
    kx, kp = jax.random.split(key)
    params = init_params(kp)

    # Batch divisible by 8, plus a ragged batch (not divisible by block_b or 8)
    # to exercise the partial last grid block.
    for BATCH in (64, 67):
        x = jax.random.normal(kx, (BATCH, INPUT_DIM), dtype=jnp.float32)

        out = neural_net_forward(x, *params)   # large block_b, auto-clamped
        out = jax.block_until_ready(out)
        assert out.shape == (BATCH, NUM_CLASSES)

        # Tight check vs a bf16-matmul / f32-accumulate reference (same math).
        ref_bf16 = reference_forward(x, *params, dot_dtype=jnp.bfloat16)
        assert jnp.allclose(out, ref_bf16, atol=2e-3, rtol=2e-3), \
            "mismatch vs bf16 reference"

        # Loose check vs the full-f32 reference (bf16 operand rounding only).
        ref_f32 = reference_forward(x, *params, dot_dtype=jnp.float32)
        assert jnp.allclose(out, ref_f32, atol=5e-2, rtol=5e-2), \
            "mismatch vs f32 reference"

    print("KERNEL_OK")
</pallas_src>

<mosaic_0001>
module attributes {stable_mosaic.version = 11 : i64} {
  func.func @_mlp_kernel(%arg0: i32, %arg1: memref<32x26xf32, #tpu.memory_space<vmem>>, %arg2: memref<26x128xbf16, #tpu.memory_space<vmem>>, %arg3: memref<1x128xf32, #tpu.memory_space<vmem>>, %arg4: memref<128x64xbf16, #tpu.memory_space<vmem>>, %arg5: memref<1x64xf32, #tpu.memory_space<vmem>>, %arg6: memref<64x4xbf16, #tpu.memory_space<vmem>>, %arg7: memref<1x4xf32, #tpu.memory_space<vmem>>, %arg8: memref<32x4xf32, #tpu.memory_space<vmem>>) attributes {dimension_semantics = [#tpu.dimension_semantics<parallel>], iteration_bounds = array<i64: 2>, scalar_prefetch = 0 : i64, scratch_operands = 0 : i64, tpu.core_type = #tpu.core_type<tc>, window_params = [{transform_indices = @transform_0, window_bounds = array<i64: 32, 26>}, {pipeline_mode = #tpu.pipeline_mode<synchronous>, transform_indices = @transform_1, window_bounds = array<i64: 26, 128>}, {pipeline_mode = #tpu.pipeline_mode<synchronous>, transform_indices = @transform_2, window_bounds = array<i64: 1, 128>}, {pipeline_mode = #tpu.pipeline_mode<synchronous>, transform_indices = @transform_3, window_bounds = array<i64: 128, 64>}, {pipeline_mode = #tpu.pipeline_mode<synchronous>, transform_indices = @transform_4, window_bounds = array<i64: 1, 64>}, {pipeline_mode = #tpu.pipeline_mode<synchronous>, transform_indices = @transform_5, window_bounds = array<i64: 64, 4>}, {pipeline_mode = #tpu.pipeline_mode<synchronous>, transform_indices = @transform_6, window_bounds = array<i64: 1, 4>}, {transform_indices = @transform_7, window_bounds = array<i64: 32, 4>}]} {
    %c0 = arith.constant 0 : index
    %c0_0 = arith.constant 0 : index
    %0 = vector.load %arg1[%c0, %c0_0] : memref<32x26xf32, #tpu.memory_space<vmem>>, vector<32x26xf32>
    %1 = arith.truncf %0 : vector<32x26xf32> to vector<32x26xbf16>
    %c0_1 = arith.constant 0 : index
    %c0_2 = arith.constant 0 : index
    %2 = vector.load %arg2[%c0_1, %c0_2] : memref<26x128xbf16, #tpu.memory_space<vmem>>, vector<26x128xbf16>
    %cst = arith.constant dense<0.000000e+00> : vector<32x128xf32>
    %3 = tpu.matmul %1, %2, %cst {dimension_numbers = #tpu.dot_dimension_numbers<[1], [0], [0], [1], [0, 0, 1, 1], [], []>} : vector<32x26xbf16>, vector<26x128xbf16>, vector<32x128xf32> -> vector<32x128xf32>
    %c0_3 = arith.constant 0 : index
    %c0_4 = arith.constant 0 : index
    %4 = vector.load %arg3[%c0_3, %c0_4] : memref<1x128xf32, #tpu.memory_space<vmem>>, vector<1x128xf32>
    %5 = vector.broadcast %4 : vector<1x128xf32> to vector<32x128xf32>
    %6 = arith.addf %3, %5 : vector<32x128xf32>
    %cst_5 = arith.constant 0.000000e+00 : f32
    %7 = vector.broadcast %cst_5 : f32 to vector<32x128xf32>
    %8 = arith.maximumf %6, %7 : vector<32x128xf32>
    %9 = arith.truncf %8 : vector<32x128xf32> to vector<32x128xbf16>
    %c0_6 = arith.constant 0 : index
    %c0_7 = arith.constant 0 : index
    %10 = vector.load %arg4[%c0_6, %c0_7] : memref<128x64xbf16, #tpu.memory_space<vmem>>, vector<128x64xbf16>
    %cst_8 = arith.constant dense<0.000000e+00> : vector<32x64xf32>
    %11 = tpu.matmul %9, %10, %cst_8 {dimension_numbers = #tpu.dot_dimension_numbers<[1], [0], [0], [1], [0, 0, 1, 1], [], []>} : vector<32x128xbf16>, vector<128x64xbf16>, vector<32x64xf32> -> vector<32x64xf32>
    %c0_9 = arith.constant 0 : index
    %c0_10 = arith.constant 0 : index
    %12 = vector.load %arg5[%c0_9, %c0_10] : memref<1x64xf32, #tpu.memory_space<vmem>>, vector<1x64xf32>
    %13 = vector.broadcast %12 : vector<1x64xf32> to vector<32x64xf32>
    %14 = arith.addf %11, %13 : vector<32x64xf32>
    %cst_11 = arith.constant 0.000000e+00 : f32
    %15 = vector.broadcast %cst_11 : f32 to vector<32x64xf32>
    %16 = arith.maximumf %14, %15 : vector<32x64xf32>
    %17 = arith.truncf %16 : vector<32x64xf32> to vector<32x64xbf16>
    %c0_12 = arith.constant 0 : index
    %c0_13 = arith.constant 0 : index
    %18 = vector.load %arg6[%c0_12, %c0_13] : memref<64x4xbf16, #tpu.memory_space<vmem>>, vector<64x4xbf16>
    %cst_14 = arith.constant dense<0.000000e+00> : vector<32x4xf32>
    %19 = tpu.matmul %17, %18, %cst_14 {dimension_numbers = #tpu.dot_dimension_numbers<[1], [0], [0], [1], [0, 0, 1, 1], [], []>} : vector<32x64xbf16>, vector<64x4xbf16>, vector<32x4xf32> -> vector<32x4xf32>
    %c0_15 = arith.constant 0 : index
    %c0_16 = arith.constant 0 : index
    %20 = vector.load %arg7[%c0_15, %c0_16] : memref<1x4xf32, #tpu.memory_space<vmem>>, vector<1x4xf32>
    %21 = vector.broadcast %20 : vector<1x4xf32> to vector<32x4xf32>
    %22 = arith.addf %19, %21 : vector<32x4xf32>
    %c0_17 = arith.constant 0 : index
    %c0_18 = arith.constant 0 : index
    %23 = vector.load %arg8[%c0_17, %c0_18] : memref<32x4xf32, #tpu.memory_space<vmem>>, vector<32x4xf32>
    tpu.vector_store %arg8[%c0_17, %c0_18], %22 {strides = array<i32>} : memref<32x4xf32, #tpu.memory_space<vmem>>, vector<32x4xf32>,
    return
  }
  func.func @transform_0(%arg0: i32) -> (i32, i32) {
    %c0_i32 = arith.constant 0 : i32
    %c0_i32_0 = arith.constant 0 : i32
    return %arg0, %c0_i32 : i32, i32
  }
  func.func @transform_1(%arg0: i32) -> (i32, i32) {
    %c0_i32 = arith.constant 0 : i32
    %c0_i32_0 = arith.constant 0 : i32
    %c0_i32_1 = arith.constant 0 : i32
    return %c0_i32, %c0_i32_0 : i32, i32
  }
  func.func @transform_2(%arg0: i32) -> (i32, i32) {
    %c0_i32 = arith.constant 0 : i32
    %c0_i32_0 = arith.constant 0 : i32
    %c0_i32_1 = arith.constant 0 : i32
    return %c0_i32, %c0_i32_0 : i32, i32
  }
  func.func @transform_3(%arg0: i32) -> (i32, i32) {
    %c0_i32 = arith.constant 0 : i32
    %c0_i32_0 = arith.constant 0 : i32
    %c0_i32_1 = arith.constant 0 : i32
    return %c0_i32, %c0_i32_0 : i32, i32
  }
  func.func @transform_4(%arg0: i32) -> (i32, i32) {
    %c0_i32 = arith.constant 0 : i32
    %c0_i32_0 = arith.constant 0 : i32
    %c0_i32_1 = arith.constant 0 : i32
    return %c0_i32, %c0_i32_0 : i32, i32
  }
  func.func @transform_5(%arg0: i32) -> (i32, i32) {
    %c0_i32 = arith.constant 0 : i32
    %c0_i32_0 = arith.constant 0 : i32
    %c0_i32_1 = arith.constant 0 : i32
    return %c0_i32, %c0_i32_0 : i32, i32
  }
  func.func @transform_6(%arg0: i32) -> (i32, i32) {
    %c0_i32 = arith.constant 0 : i32
    %c0_i32_0 = arith.constant 0 : i32
    %c0_i32_1 = arith.constant 0 : i32
    return %c0_i32, %c0_i32_0 : i32, i32
  }
  func.func @transform_7(%arg0: i32) -> (i32, i32) {
    %c0_i32 = arith.constant 0 : i32
    %c0_i32_0 = arith.constant 0 : i32
    return %arg0, %c0_i32 : i32, i32
  }
}

</mosaic_0001>

<llo_original>
// kernel: _forward_impl.1
$region0: #{_forward_impl.1}
  #allocation0 [shape = 'u32[]', space=smem, size = 0x4, offset = 0x4, fixed_abs, tag = 'smem constant byte address 0x4 - core index']
  #allocation1 [shape = 'u32[72,128]{1,0:T(1,128)}', space=vmem, size = 0x9000, scoped, tag = 'internal scratch']
  %s0 = inlined_call_operand.vmem [shape: f32[64,26], index: 0, kind: input, shape index: {}]
  %s1 = inlined_call_operand.vmem [shape: bf16[26,128], index: 1, kind: input, shape index: {}]
  %s2 = inlined_call_operand.vmem [shape: f32[1,128], index: 2, kind: input, shape index: {}]
  %s3 = inlined_call_operand.vmem [shape: bf16[128,64], index: 3, kind: input, shape index: {}]
  %s4 = inlined_call_operand.vmem [shape: f32[1,64], index: 4, kind: input, shape index: {}]
  %s5 = inlined_call_operand.vmem [shape: bf16[64,4], index: 5, kind: input, shape index: {}]
  %s6 = inlined_call_operand.vmem [shape: f32[1,4], index: 6, kind: input, shape index: {}]
  %s7 = inlined_call_operand.vmem [shape: f32[64,4], index: 7, kind: output, shape index: {}]
  %s8 = sld [smem:[#allocation0]]
  $region61: #{_forward_impl.1} parent=0
    _
  %s10 = ssub.s32 1, %s8
  %s11 = scalar_select 0, %s10, %s8
  loop: start=0, step=1, limit=4
  $region2: #{_forward_impl.1} parent=0 // loop_pre_header
    _
  $region3: #{_forward_impl.1} parent=0 // loop_header
    %s13 = sphi 0, %s17
    %p14 = scmp.ge.s32.totalorder %s13, 4
    %s23 = sphi 0, %s25
    %s26 = sphi 0, %s23
    %s27 = sphi 0, %s26
    %s43 = sphi 0, %s27
    %s47 = sphi 0, %s47
    %s49 = sphi 0, %s47
    %s50 = sphi 0, %s49
    %s64 = sphi 0, %s50
    %s68 = sphi 0, %s68
    %s70 = sphi 0, %s68
    %s71 = sphi 0, %s70
    %s85 = sphi 0, %s71
    %s89 = sphi 0, %s89
    %s91 = sphi 0, %s89
    %s92 = sphi 0, %s91
    %s106 = sphi 0, %s92
    %s110 = sphi 0, %s110
    %s112 = sphi 0, %s110
    %s113 = sphi 0, %s112
    %s127 = sphi 0, %s113
    %s131 = sphi 0, %s131
    %s133 = sphi 0, %s131
    %s134 = sphi 0, %s133
    %s148 = sphi 0, %s134
    %s152 = sphi 0, %s152
    %s154 = sphi 0, %s152
    %s155 = sphi 0, %s154
    %s169 = sphi 0, %s155
    %s175 = sphi 0, %s177
    %s178 = sphi 0, %s175
    %s179 = sphi 0, %s178
    %s195 = sphi 0, %s179
  $region4: #{_forward_impl.1} parent=0 // loop_header_branch
    %16 = sbr.rel (%p14) target = $region8
  $region5: #{_forward_impl.1} parent=0 // loop_body
    %s18 = ssub.s32 %s13, 1
    %s19 = ssub.s32 %s13, 2
    %s20 = sadd.s32 %s13, 1
    %s21 = ssub.s32 %s13, %s20
    %p22 = scmp.eq.s32.totalorder %s21, 0
    %s24 = sadd.s32 %s23, 1
    %s25 = scalar_select %p22, %s23, %s24
    %p28 = pneg %p22
    %p29 = scmp.eq.s32.totalorder %s13, 1
    %p30 = por %p28, %p29
    %p31 = scmp.ne.s32.totalorder %s23, %s26
    %p32 = scmp.eq.s32.totalorder %s13, 0
    %p33 = por %p31, %p32
    %p34 = scmp.ne.s32.totalorder %s23, %s26
    %p35 = scmp.eq.s32.totalorder %s18, 1
    %p36 = por %p34, %p35
    %p37 = scmp.ne.s32.totalorder %s26, %s27
    %p38 = scmp.eq.s32.totalorder %s18, 0
    %p39 = por %p37, %p38
    %p40 = scmp.ne.s32.totalorder %s26, %s27
    %p41 = scmp.eq.s32.totalorder %s19, 1
    %p42 = por %p40, %p41
    %p44 = scmp.ne.s32.totalorder %s27, %s43
    %p45 = scmp.eq.s32.totalorder %s19, 0
    %p46 = por %p44, %p45
    %s48 = sadd.s32 %s47, 1
    %p51 = scmp.eq.s32.totalorder %s13, 1
    %p52 = scmp.ne.s32.totalorder %s47, %s49
    %p53 = scmp.eq.s32.totalorder %s13, 0
    %p54 = por %p52, %p53
    %p55 = scmp.ne.s32.totalorder %s47, %s49
    %p56 = scmp.eq.s32.totalorder %s18, 1
    %p57 = por %p55, %p56
    %p58 = scmp.ne.s32.totalorder %s49, %s50
    %p59 = scmp.eq.s32.totalorder %s18, 0
    %p60 = por %p58, %p59
    %p61 = scmp.ne.s32.totalorder %s49, %s50
    %p62 = scmp.eq.s32.totalorder %s19, 1
    %p63 = por %p61, %p62
    %p65 = scmp.ne.s32.totalorder %s50, %s64
    %p66 = scmp.eq.s32.totalorder %s19, 0
    %p67 = por %p65, %p66
    %s69 = sadd.s32 %s68, 1
    %p72 = scmp.eq.s32.totalorder %s13, 1
    %p73 = scmp.ne.s32.totalorder %s68, %s70
    %p74 = scmp.eq.s32.totalorder %s13, 0
    %p75 = por %p73, %p74
    %p76 = scmp.ne.s32.totalorder %s68, %s70
    %p77 = scmp.eq.s32.totalorder %s18, 1
    %p78 = por %p76, %p77
    %p79 = scmp.ne.s32.totalorder %s70, %s71
    %p80 = scmp.eq.s32.totalorder %s18, 0
    %p81 = por %p79, %p80
    %p82 = scmp.ne.s32.totalorder %s70, %s71
    %p83 = scmp.eq.s32.totalorder %s19, 1
    %p84 = por %p82, %p83
    %p86 = scmp.ne.s32.totalorder %s71, %s85
    %p87 = scmp.eq.s32.totalorder %s19, 0
    %p88 = por %p86, %p87
    %s90 = sadd.s32 %s89, 1
    %p93 = scmp.eq.s32.totalorder %s13, 1
    %p94 = scmp.ne.s32.totalorder %s89, %s91
    %p95 = scmp.eq.s32.totalorder %s13, 0
    %p96 = por %p94, %p95
    %p97 = scmp.ne.s32.totalorder %s89, %s91
    %p98 = scmp.eq.s32.totalorder %s18, 1
    %p99 = por %p97, %p98
    %p100 = scmp.ne.s32.totalorder %s91, %s92
    %p101 = scmp.eq.s32.totalorder %s18, 0
    %p102 = por %p100, %p101
    %p103 = scmp.ne.s32.totalorder %s91, %s92
    %p104 = scmp.eq.s32.totalorder %s19, 1
    %p105 = por %p103, %p104
    %p107 = scmp.ne.s32.totalorder %s92, %s106
    %p108 = scmp.eq.s32.totalorder %s19, 0
    %p109 = por %p107, %p108
    %s111 = sadd.s32 %s110, 1
    %p114 = scmp.eq.s32.totalorder %s13, 1
    %p115 = scmp.ne.s32.totalorder %s110, %s112
    %p116 = scmp.eq.s32.totalorder %s13, 0
    %p117 = por %p115, %p116
    %p118 = scmp.ne.s32.totalorder %s110, %s112
    %p119 = scmp.eq.s32.totalorder %s18, 1
    %p120 = por %p118, %p119
    %p121 = scmp.ne.s32.totalorder %s112, %s113
    %p122 = scmp.eq.s32.totalorder %s18, 0
    %p123 = por %p121, %p122
    %p124 = scmp.ne.s32.totalorder %s112, %s113
    %p125 = scmp.eq.s32.totalorder %s19, 1
    %p126 = por %p124, %p125
    %p128 = scmp.ne.s32.totalorder %s113, %s127
    %p129 = scmp.eq.s32.totalorder %s19, 0
    %p130 = por %p128, %p129
    %s132 = sadd.s32 %s131, 1
    %p135 = scmp.eq.s32.totalorder %s13, 1
    %p136 = scmp.ne.s32.totalorder %s131, %s133
    %p137 = scmp.eq.s32.totalorder %s13, 0
    %p138 = por %p136, %p137
    %p139 = scmp.ne.s32.totalorder %s131, %s133
    %p140 = scmp.eq.s32.totalorder %s18, 1
    %p141 = por %p139, %p140
    %p142 = scmp.ne.s32.totalorder %s133, %s134
    %p143 = scmp.eq.s32.totalorder %s18, 0
    %p144 = por %p142, %p143
    %p145 = scmp.ne.s32.totalorder %s133, %s134
    %p146 = scmp.eq.s32.totalorder %s19, 1
    %p147 = por %p145, %p146
    %p149 = scmp.ne.s32.totalorder %s134, %s148
    %p150 = scmp.eq.s32.totalorder %s19, 0
    %p151 = por %p149, %p150
    %s153 = sadd.s32 %s152, 1
    %p156 = scmp.eq.s32.totalorder %s13, 1
    %p157 = scmp.ne.s32.totalorder %s152, %s154
    %p158 = scmp.eq.s32.totalorder %s13, 0
    %p159 = por %p157, %p158
    %p160 = scmp.ne.s32.totalorder %s152, %s154
    %p161 = scmp.eq.s32.totalorder %s18, 1
    %p162 = por %p160, %p161
    %p163 = scmp.ne.s32.totalorder %s154, %s155
    %p164 = scmp.eq.s32.totalorder %s18, 0
    %p165 = por %p163, %p164
    %p166 = scmp.ne.s32.totalorder %s154, %s155
    %p167 = scmp.eq.s32.totalorder %s19, 1
    %p168 = por %p166, %p167
    %p170 = scmp.ne.s32.totalorder %s155, %s169
    %p171 = scmp.eq.s32.totalorder %s19, 0
    %p172 = por %p170, %p171
    %s173 = ssub.s32 %s13, %s20
    %p174 = scmp.eq.s32.totalorder %s173, 0
    %s176 = sadd.s32 %s175, 1
    %s177 = scalar_select %p174, %s175, %s176
    %p180 = pneg %p174
    %p181 = scmp.eq.s32.totalorder %s13, 1
    %p182 = por %p180, %p181
    %p183 = scmp.ne.s32.totalorder %s175, %s178
    %p184 = scmp.eq.s32.totalorder %s13, 0
    %p185 = por %p183, %p184
    %p186 = scmp.ne.s32.totalorder %s175, %s178
    %p187 = scmp.eq.s32.totalorder %s18, 1
    %p188 = por %p186, %p187
    %p189 = scmp.ne.s32.totalorder %s178, %s179
    %p190 = scmp.eq.s32.totalorder %s18, 0
    %p191 = por %p189, %p190
    %p192 = scmp.ne.s32.totalorder %s178, %s179
    %p193 = scmp.eq.s32.totalorder %s19, 1
    %p194 = por %p192, %p193
    %p196 = scmp.ne.s32.totalorder %s179, %s195
    %p197 = scmp.eq.s32.totalorder %s19, 0
    %p198 = por %p196, %p197
    %p199 = scmp.le.s32.totalorder 1, %s13
    %p200 = scmp.lt.s32.totalorder %s13, 3
    %p201 = pnand %p199, %p200
    %p202 = pneg %p201
    // Predicated region
    $region9: #{_forward_impl.1} parent=5 // pred_check
      _
    $region10: #{_forward_impl.1} parent=5 // pred_check_branch
      %204 = sbr.rel (%p201) target = $region12
    $region11: #{_forward_impl.1} parent=5 // pred_region
      %s205 = ssub.s32 %s13, 1
      // Predicated region
      $region13: #{_forward_impl.1} parent=11 // pred_check
        %p206 = pneg %p60
      $region14: #{_forward_impl.1} parent=11 // pred_check_branch
        %208 = sbr.rel (%p206) target = $region16
      $region15: #{_forward_impl.1} parent=11 // pred_region
        _
      $region16: #{_forward_impl.1} parent=11 // pred_fallthru
        _
      // Predicated region
      $region17: #{_forward_impl.1} parent=11 // pred_check
        %p209 = pneg %p81
      $region18: #{_forward_impl.1} parent=11 // pred_check_branch
        %211 = sbr.rel (%p209) target = $region20
      $region19: #{_forward_impl.1} parent=11 // pred_region
        _
      $region20: #{_forward_impl.1} parent=11 // pred_fallthru
        _
      // Predicated region
      $region21: #{_forward_impl.1} parent=11 // pred_check
        %p212 = pneg %p102
      $region22: #{_forward_impl.1} parent=11 // pred_check_branch
        %214 = sbr.rel (%p212) target = $region24
      $region23: #{_forward_impl.1} parent=11 // pred_region
        _
      $region24: #{_forward_impl.1} parent=11 // pred_fallthru
        _
      // Predicated region
      $region25: #{_forward_impl.1} parent=11 // pred_check
        %p215 = pneg %p123
      $region26: #{_forward_impl.1} parent=11 // pred_check_branch
        %217 = sbr.rel (%p215) target = $region28
      $region27: #{_forward_impl.1} parent=11 // pred_region
        _
      $region28: #{_forward_impl.1} parent=11 // pred_fallthru
        _
      // Predicated region
      $region29: #{_forward_impl.1} parent=11 // pred_check
        %p218 = pneg %p144
      $region30: #{_forward_impl.1} parent=11 // pred_check_branch
        %220 = sbr.rel (%p218) target = $region32
      $region31: #{_forward_impl.1} parent=11 // pred_region
        _
      $region32: #{_forward_impl.1} parent=11 // pred_fallthru
        _
      // Predicated region
      $region33: #{_forward_impl.1} parent=11 // pred_check
        %p221 = pneg %p165
      $region34: #{_forward_impl.1} parent=11 // pred_check_branch
        %223 = sbr.rel (%p221) target = $region36
      $region35: #{_forward_impl.1} parent=11 // pred_region
        _
      $region36: #{_forward_impl.1} parent=11 // pred_fallthru
        _
    $region12: #{_forward_impl.1} parent=5 // pred_fallthru
      _
    %p224 = scmp.lt.s32.totalorder %s13, 2
    // Predicated region
    $region37: #{_forward_impl.1} parent=5 // pred_check
      %p225 = pneg %p224
    $region38: #{_forward_impl.1} parent=5 // pred_check_branch
      %227 = sbr.rel (%p225) target = $region40
    $region39: #{_forward_impl.1} parent=5 // pred_region
      // Predicated region
      $region41: #{_forward_impl.1} parent=39 // pred_check
        %p228 = pneg %p33
      $region42: #{_forward_impl.1} parent=39 // pred_check_branch
        %230 = sbr.rel (%p228) target = $region44
      $region43: #{_forward_impl.1} parent=39 // pred_region
        %s231 = smul.u32 4, %s13
        %p232 = scmp.lt.s32.totalorder %s231, 7
        %s233 = scalar_select %p232, %s231, 7
        %s234 = smul.addr %s233, 8
        %s235 = scalar_lea.vmem %s0, %s234
        %s236 = smul.u32 4, %s13
      $region44: #{_forward_impl.1} parent=39 // pred_fallthru
        _
    $region40: #{_forward_impl.1} parent=5 // pred_fallthru
      _
    %p237 = scmp.le.s32.totalorder 1, %s13
    %p238 = scmp.lt.s32.totalorder %s13, 3
    %p239 = pnand %p237, %p238
    %p240 = pneg %p239
    // Predicated region
    $region45: #{_forward_impl.1} parent=5 // pred_check
      _
    $region46: #{_forward_impl.1} parent=5 // pred_check_branch
      %242 = sbr.rel (%p239) target = $region48
    $region47: #{_forward_impl.1} parent=5 // pred_region
      %s243 = ssub.s32 %s13, 1
      %s244 = smul.u32 4, %s18
      %p245 = scmp.lt.s32.totalorder %s244, 7
      %s246 = scalar_select %p245, %s244, 7
      %s247 = smul.addr %s246, 8
      %s248 = scalar_lea.vmem %s0, %s247
      %p249 = pneg %p39
      %p250 = pneg %p36
      %p251 = pneg %p60
      %p252 = pneg %p57
      %p253 = pneg %p81
      %p254 = pneg %p78
      %p255 = pneg %p102
      %p256 = pneg %p99
      %p257 = pneg %p123
      %p258 = pneg %p120
      %p259 = pneg %p144
      %p260 = pneg %p141
      %p261 = pneg %p165
      %p262 = pneg %p162
      %p263 = pneg %p191
      %p264 = pneg %p188
      %s265 = smul.u32 4, %s18
      %p266 = scmp.lt.s32.totalorder %s265, 7
      %s267 = scalar_select %p266, %s265, 7
      %s268 = smul.addr %s267, 8
      %s269 = scalar_lea.vmem %s7, %s268
      %s270 = smul.u32 4, %s18
      %p271 = scmp.lt.s32.totalorder %s270, 7
      %s272 = scalar_select %p271, %s270, 7
      %s273 = smul.addr %s272, 8
      %s274 = scalar_lea.vmem %s0, %s273
      %s275 = smul.u32 4, %s18
      %s276 = smul.u32 4, %s18
      %p277 = scmp.lt.s32.totalorder %s276, 7
      %s278 = scalar_select %p277, %s276, 7
      %s279 = smul.addr %s278, 8
      %s280 = scalar_lea.vmem %s7, %s279
      %s281 = smul.u32 4, %s18
      %v283 = vld [vmem:[%s274] sm:$0xff]
      %v284 = vld [vmem:[%s274 + $0x8] sm:$0xff]
      %v285 = vld [vmem:[%s274 + $0x10] sm:$0xff]
      %v286 = vld [vmem:[%s274 + $0x18] sm:$0xff]
      %v287 = vpack.c.bf16 %v284, %v283
      %v288 = vpack.c.bf16 %v286, %v285
      %v289 = vld [vmem:[%s1] sm:$0xf]
      %v290 = vld [vmem:[%s1 + $0x4] sm:$0xf]
      %v291 = vld [vmem:[%s1 + $0x8] sm:$0xf]
      %v292 = vld [vmem:[%s1 + $0xc] sm:$0x1]
      %v293 = vld [vmem:[%s2] sm:$0x1]
      %v295 = vperm.slane %v293, 0
      %v301 = vunpack.c.l.b16 %v289
      %v302 = vunpack.c.l.b16 %v290
      %v303 = vunpack.c.l.b16 %v291
      %v304 = vunpack.c.l.b16 %v292
      %v305 = vpack.c.b16 %v302, %v301
      %v306 = vpack.c.b16 %v304, %v303
      %vm308 = vcmask 211968
      %v310 = vsel %vm308, %v287, 0
      %v313 = vsel %vm308, %v288, 0
      %vm315 = vcmask 1044480
      %v317 = vsel %vm315, %v306, 0
      %319 = vmatpush.bf16.msra.mxu0 0
      %320 = vmatpush.bf16.msra.mxu0 0
      %321 = vmatpush.bf16.msra.mxu0 0
      %322 = vmatpush.bf16.msra.mxu0 0
      %323 = vmatpush.bf16.msra.mxu0 0
      %324 = vmatpush.bf16.msra.mxu0 0
      %325 = vmatpush.bf16.msra.mxu0 %v317
      %326 = vmatpush.bf16.msra.mxu0 %v305
      %327 = vmatmul.bf16.gmra.mxu0 %v310
      %v328 = vpop.f32.mrf.mxu0
      %v329 = vadd.f32 %v295, %v328
      %v330 = vpop.f32.mrf.mxu0
      %v331 = vadd.f32 %v295, %v330
      %332 = vmatmul.bf16.gmra.mxu0 %v313
      %v333 = vpop.f32.mrf.mxu0
      %v334 = vadd.f32 %v295, %v333
      %v335 = vpop.f32.mrf.mxu0
      %v336 = vadd.f32 %v295, %v335
      %337 = vdwg.mxu0
      %v338 = vmax.f32 %v329, 0.0
      %v339 = vmax.f32 %v331, 0.0
      %v340 = vmax.f32 %v334, 0.0
      %v341 = vmax.f32 %v336, 0.0
      %v342 = vpack.c.bf16 %v339, %v338
      %v343 = vpack.c.bf16 %v341, %v340
      %v344 = vld [vmem:[%s3] sm:$0xf]
      %v345 = vld [vmem:[%s3 + $0x4] sm:$0xf]
      %v346 = vld [vmem:[%s3 + $0x8] sm:$0xf]
      %v347 = vld [vmem:[%s3 + $0xc] sm:$0xf]
      %v348 = vld [vmem:[%s3 + $0x10] sm:$0xf]
      %v349 = vld [vmem:[%s3 + $0x14] sm:$0xf]
      %v350 = vld [vmem:[%s3 + $0x18] sm:$0xf]
      %v351 = vld [vmem:[%s3 + $0x1c] sm:$0xf]
      %v352 = vld [vmem:[%s3 + $0x20] sm:$0xf]
      %v353 = vld [vmem:[%s3 + $0x24] sm:$0xf]
      %v354 = vld [vmem:[%s3 + $0x28] sm:$0xf]
      %v355 = vld [vmem:[%s3 + $0x2c] sm:$0xf]
      %v356 = vld [vmem:[%s3 + $0x30] sm:$0xf]
      %v357 = vld [vmem:[%s3 + $0x34] sm:$0xf]
      %v358 = vld [vmem:[%s3 + $0x38] sm:$0xf]
      %v359 = vld [vmem:[%s3 + $0x3c] sm:$0xf]
      %v360 = vld [vmem:[%s4] sm:$0x1]
      %v362 = vperm.slane %v360, 0
      %v380 = vunpack.c.l.b16 %v344
      %v381 = vunpack.c.l.b16 %v345
      %v382 = vunpack.c.l.b16 %v346
      %v383 = vunpack.c.l.b16 %v347
      %v384 = vunpack.c.l.b16 %v348
      %v385 = vunpack.c.l.b16 %v349
      %v386 = vunpack.c.l.b16 %v350
      %v387 = vunpack.c.l.b16 %v351
      %v388 = vunpack.c.l.b16 %v352
      %v389 = vunpack.c.l.b16 %v353
      %v390 = vunpack.c.l.b16 %v354
      %v391 = vunpack.c.l.b16 %v355
      %v392 = vunpack.c.l.b16 %v356
      %v393 = vunpack.c.l.b16 %v357
      %v394 = vunpack.c.l.b16 %v358
      %v395 = vunpack.c.l.b16 %v359
      %v396 = vpack.c.b16 %v381, %v380
      %v397 = vpack.c.b16 %v383, %v382
      %v398 = vpack.c.b16 %v385, %v384
      %v399 = vpack.c.b16 %v387, %v386
      %v400 = vpack.c.b16 %v389, %v388
      %v401 = vpack.c.b16 %v391, %v390
      %v402 = vpack.c.b16 %v393, %v392
      %v403 = vpack.c.b16 %v395, %v394
      %412 = vmatpush.bf16.msra.mxu0 %v403
      %413 = vmatpush.bf16.msra.mxu0 %v402
      %414 = vmatpush.bf16.msra.mxu0 %v401
      %415 = vmatpush.bf16.msra.mxu0 %v400
      %416 = vmatpush.bf16.msra.mxu0 %v399
      %417 = vmatpush.bf16.msra.mxu0 %v398
      %418 = vmatpush.bf16.msra.mxu0 %v397
      %419 = vmatpush.bf16.msra.mxu0 %v396
      %420 = vmatmul.bf16.gmra.mxu0 %v342
      %v421 = vpop.f32.mrf.mxu0
      %v422 = vadd.f32 %v362, %v421
      %v423 = vpop.f32.mrf.mxu0
      %v424 = vadd.f32 %v362, %v423
      %425 = vmatmul.bf16.gmra.mxu0 %v343
      %v426 = vpop.f32.mrf.mxu0
      %v427 = vadd.f32 %v362, %v426
      %v428 = vpop.f32.mrf.mxu0
      %v429 = vadd.f32 %v362, %v428
      %430 = vdwg.mxu0
      %v431 = vmax.f32 %v422, 0.0
      %v432 = vmax.f32 %v424, 0.0
      %v433 = vmax.f32 %v427, 0.0
      %v434 = vmax.f32 %v429, 0.0
      %v435 = vpack.c.bf16 %v432, %v431
      %v436 = vpack.c.bf16 %v434, %v433
      %v437 = vld [vmem:[%s5] sm:$0xf]
      %v438 = vld [vmem:[%s5 + $0x4] sm:$0xf]
      %v439 = vld [vmem:[%s5 + $0x8] sm:$0xf]
      %v440 = vld [vmem:[%s5 + $0xc] sm:$0xf]
      %v441 = vld [vmem:[%s5 + $0x10] sm:$0xf]
      %v442 = vld [vmem:[%s5 + $0x14] sm:$0xf]
      %v443 = vld [vmem:[%s5 + $0x18] sm:$0xf]
      %v444 = vld [vmem:[%s5 + $0x1c] sm:$0xf]
      %v445 = vld [vmem:[%s6] sm:$0x1]
      %v447 = vperm.slane %v445, 0
      %v457 = vunpack.c.l.b16 %v437
      %v458 = vunpack.c.l.b16 %v438
      %v459 = vunpack.c.l.b16 %v439
      %v460 = vunpack.c.l.b16 %v440
      %v461 = vunpack.c.l.b16 %v441
      %v462 = vunpack.c.l.b16 %v442
      %v463 = vunpack.c.l.b16 %v443
      %v464 = vunpack.c.l.b16 %v444
      %v465 = vpack.c.b16 %v458, %v457
      %v466 = vpack.c.b16 %v460, %v459
      %v467 = vpack.c.b16 %v462, %v461
      %v468 = vpack.c.b16 %v464, %v463
      %vm473 = vcmask 523264
      %v475 = vsel %vm473, %v435, 0
      %v478 = vsel %vm473, %v436, 0
      %480 = vmatpush.bf16.msra.mxu0 0
      %481 = vmatpush.bf16.msra.mxu0 0
      %482 = vmatpush.bf16.msra.mxu0 0
      %483 = vmatpush.bf16.msra.mxu0 0
      %484 = vmatpush.bf16.msra.mxu0 %v468
      %485 = vmatpush.bf16.msra.mxu0 %v467
      %486 = vmatpush.bf16.msra.mxu0 %v466
      %487 = vmatpush.bf16.msra.mxu0 %v465
      %488 = vmatmul.bf16.gmra.mxu0 %v475
      %v489 = vpop.f32.mrf.mxu0
      %v490 = vadd.f32 %v447, %v489
      %v491 = vpop.f32.mrf.mxu0
      %v492 = vadd.f32 %v447, %v491
      %493 = vmatmul.bf16.gmra.mxu0 %v478
      %v494 = vpop.f32.mrf.mxu0
      %v495 = vadd.f32 %v447, %v494
      %v496 = vpop.f32.mrf.mxu0
      %v497 = vadd.f32 %v447, %v496
      %498 = vdwg.mxu0
      %vm499 = vcmask 31744
      %500 = vst.msk [vmem:[%s280] sm:$0xff] %vm499, %v490
      %501 = vst.msk [vmem:[%s280 + $0x8] sm:$0xff] %vm499, %v492
      %502 = vst.msk [vmem:[%s280 + $0x10] sm:$0xff] %vm499, %v495
      %503 = vst.msk [vmem:[%s280 + $0x18] sm:$0xff] %vm499, %v497
      %s504 = smul.u32 4, %s18
      %p505 = scmp.lt.s32.totalorder %s504, 7
      %s506 = scalar_select %p505, %s504, 7
      %s507 = smul.addr %s506, 8
      %s508 = scalar_lea.vmem %s7, %s507
      // Predicated region
      $region49: #{_forward_impl.1} parent=47 // pred_check
        %p509 = pneg %p188
      $region50: #{_forward_impl.1} parent=47 // pred_check_branch
        %511 = sbr.rel (%p509) target = $region52
      $region51: #{_forward_impl.1} parent=47 // pred_region
        %s512 = smul.u32 4, %s18
      $region52: #{_forward_impl.1} parent=47 // pred_fallthru
        _
    $region48: #{_forward_impl.1} parent=5 // pred_fallthru
      _
    %p513 = scmp.le.s32.totalorder 2, %s13
    // Predicated region
    $region53: #{_forward_impl.1} parent=5 // pred_check
      %p514 = pneg %p513
    $region54: #{_forward_impl.1} parent=5 // pred_check_branch
      %516 = sbr.rel (%p514) target = $region56
    $region55: #{_forward_impl.1} parent=5 // pred_region
      %s517 = ssub.s32 %s13, 2
      // Predicated region
      $region57: #{_forward_impl.1} parent=55 // pred_check
        %p518 = pneg %p194
      $region58: #{_forward_impl.1} parent=55 // pred_check_branch
        %520 = sbr.rel (%p518) target = $region60
      $region59: #{_forward_impl.1} parent=55 // pred_region
        %s521 = smul.u32 4, %s19
        %p522 = scmp.lt.s32.totalorder %s521, 7
        %s523 = scalar_select %p522, %s521, 7
        %s524 = smul.addr %s523, 8
        %s525 = scalar_lea.vmem %s7, %s524
      $region60: #{_forward_impl.1} parent=55 // pred_fallthru
        _
    $region56: #{_forward_impl.1} parent=5 // pred_fallthru
      _
  $region6: #{_forward_impl.1} parent=0 // loop_footer
    %s17 = sadd.s32 1, %s13
  $region7: #{_forward_impl.1} parent=0 // loop_footer_branch
    %12 = sbr.rel target = $region3
  $region8: #{_forward_impl.1} parent=0 // loop_exit
    _

</llo_original>
